<compile_context>
chip_gen: v7x
topology: tpu7x:2x2x1
jax: 0.10.0
libtpu: 0.0.40
codegen_flags: <defaults>
</compile_context>

<pallas_src>
import functools

import jax
import jax.numpy as jnp
from jax.experimental import pallas as pl
from jax.experimental.pallas import tpu as pltpu

_LANE = 128


def _round_up(n, m):
    return ((n + m - 1) // m) * m


def _vmem_capacity_bytes():
    try:
        return int(pltpu.get_tpu_info().vmem_capacity_bytes)
    except Exception:
        return 64 * 2**20  # smallest across generations (v7x) -> always safe


def _ensemble_kernel(x_ref, w_ref, b_ref, o_ref, *, geometric, c_pad, mg,
                     mt_inner, m_total, m_pad):
    """Grid: (batch tiles [parallel], member groups [arbitrary/reduction]).

    x_ref : [TILE_B, D]            bf16, batch tile
    w_ref : [D, mg * C_pad]        bf16, this member group's packed weights
                                   (constant block index when mg == M -> W is
                                   fetched from HBM exactly once)
    b_ref : [mg, 1, C_pad]         f32 biases (-inf on padded class columns)
    o_ref : [TILE_B, C_pad]        f32 accumulator (resident across member axis)
    """
    mi = pl.program_id(1)

    @pl.when(mi == 0)
    def _():
        o_ref[...] = jnp.zeros_like(o_ref)

    x = x_ref[...]
    # Local member indices >= pad_start can be dummy padding in the last group.
    pad_start = mg - (m_pad - m_total)

    # Static loop over small sub-chunks: bounds the materialized f32 logits to
    # [TILE_B, mt_inner*C_pad] while keeping MXU N lane-dense (multiple of 128).
    for c0 in range(0, mg, mt_inner):
        cw = min(mt_inner, mg - c0)
        logits_all = jnp.dot(
            x, w_ref[:, c0 * c_pad:(c0 + cw) * c_pad],
            preferred_element_type=jnp.float32)          # [TILE_B, cw*C_pad]
        for j in range(cw):                              # static unroll
            lj = c0 + j                                  # local member index
            logits = logits_all[:, j * c_pad:(j + 1) * c_pad] + b_ref[lj]
            mx = jnp.max(logits, axis=-1, keepdims=True)
            shifted = logits - mx
            ex = jnp.exp(shifted)
            denom = jnp.sum(ex, axis=-1, keepdims=True)
            if geometric:
                contrib = shifted - jnp.log(denom)       # log_softmax
            else:
                # EUP reciprocal + one Newton refinement (near-exact).
                r = pl.reciprocal(denom, approx=True)
                r = r * (2.0 - denom * r)
                contrib = ex * r                         # softmax
            if lj >= pad_start:
                # Possibly a dummy (padding) member: mask with a scalar
                # predicate instead of -inf logits (which would NaN).
                contrib = jnp.where(mi * mg + lj < m_total, contrib, 0.0)
            # Accumulate straight into the resident output tile (no big
            # register accumulator across the unrolled loop).
            o_ref[...] += contrib


def pack_ensemble_params(W, b):
    """One-time repack of ensemble parameters (hoisted out of the hot path).

    W: [M, D, C] f32, b: [M, 1, C] f32.
    Returns dict with packed bf16 weights, padded f32 biases and static meta.
    """
    M, D, C = W.shape
    c_pad = _round_up(C, _LANE)

    vmem_cap = _vmem_capacity_bytes()
    budget = int(0.75 * vmem_cap)

    # Members per grid step: as many as fit in ~40% of the budget for the
    # (double-buffered) bf16 W block. If mg == M the W block index is constant
    # and the full packed W is fetched from HBM exactly once.
    w_bytes_per_member = D * c_pad * 2
    mg_cap = max(1, int(0.40 * budget) // (2 * w_bytes_per_member))
    mg = min(M, mg_cap)
    num_groups = -(-M // mg)
    m_pad = num_groups * mg
    # Sub-chunk size for the in-kernel matmul: fill ~256 MXU N lanes.
    mt_inner = max(1, min(mg, 256 // c_pad))

    # W: [M, D, C] -> [D, M_pad*C_pad] bf16; padded classes / dummy members = 0.
    W_p = jnp.zeros((m_pad, D, c_pad), dtype=jnp.float32).at[:M, :, :C].set(W)
    W_pack = (jnp.transpose(W_p, (1, 0, 2))
              .reshape(D, m_pad * c_pad).astype(jnp.bfloat16))
    # bias: -inf on padded class columns (zero softmax mass); dummy members get
    # finite (zero) real-class biases and are masked in-kernel (never all -inf).
    b_pack = jnp.full((m_pad, 1, c_pad), -jnp.inf, dtype=jnp.float32)
    b_pack = b_pack.at[:M, :, :C].set(b)
    b_pack = b_pack.at[M:, :, :C].set(0.0)

    meta = dict(M=M, M_pad=m_pad, D=D, C=C, c_pad=c_pad, mg=mg,
                mt_inner=mt_inner, num_groups=num_groups,
                budget=budget, vmem_cap=vmem_cap)
    return {"W": W_pack, "b": b_pack, "meta": meta}


def ensemble_forward_packed(x, packed, average_func="arithmetic"):
    """x: [B, D] f32 + pre-packed params -> [B, C] f32."""
    W_pack, b_pack, meta = packed["W"], packed["b"], packed["meta"]
    B, D = x.shape
    assert D == meta["D"]
    geometric = (average_func == "geometric")
    c_pad, mg, mt_inner = meta["c_pad"], meta["mg"], meta["mt_inner"]
    M, M_pad, num_groups = meta["M"], meta["M_pad"], meta["num_groups"]
    budget = meta["budget"]

    # --- batch tile from the remaining VMEM budget (generation-aware) -------
    fixed = (2 * D * mg * c_pad * 2          # W group block, double-buffered
             + 2 * mg * 8 * c_pad * 4)       # bias block (sublane-padded)
    per_row = (2 * D * 2                      # x tile (bf16, double-buffered)
               + 2 * c_pad * 4                # output tile (f32, double-buffered)
               + mt_inner * c_pad * 4         # materialized logits sub-chunk
               + 6 * c_pad * 4)               # softmax temporaries headroom
    avail = max(budget - fixed, per_row * 16)
    tile_cap = max(16, min(512, (avail // per_row) // 16 * 16))

    b_round = _round_up(B, 16)                # bf16 sublane-friendly
    tile_b = min(tile_cap, b_round)
    # Prefer >= 2 batch tiles so the v7x megacore split has work on both TCs.
    if b_round > 16 and -(-b_round // tile_b) < 2:
        tile_b = max(16, _round_up(-(-b_round // 2), 16))
    b_rows = -(-B // tile_b) * tile_b

    x_pack = jnp.zeros((b_rows, D), dtype=jnp.bfloat16).at[:B, :].set(
        x.astype(jnp.bfloat16))

    grid = (b_rows // tile_b, num_groups)

    est = (fixed + 2 * tile_b * D * 2 + 2 * tile_b * c_pad * 4
           + tile_b * mt_inner * c_pad * 4 + 6 * tile_b * c_pad * 4)
    vmem_limit = int(min(budget, max(2 * est, 16 * 2**20)))

    kernel = functools.partial(_ensemble_kernel, geometric=geometric,
                               c_pad=c_pad, mg=mg, mt_inner=mt_inner,
                               m_total=M, m_pad=M_pad)

    out = pl.pallas_call(
        kernel,
        out_shape=jax.ShapeDtypeStruct((b_rows, c_pad), jnp.float32),
        grid_spec=pltpu.PrefetchScalarGridSpec(
            num_scalar_prefetch=0,
            grid=grid,
            in_specs=[
                pl.BlockSpec((tile_b, D), lambda bi, mi: (bi, 0)),         # x
                pl.BlockSpec((D, mg * c_pad), lambda bi, mi: (0, mi)),     # W grp
                pl.BlockSpec((mg, 1, c_pad), lambda bi, mi: (mi, 0, 0)),   # b grp
            ],
            out_specs=pl.BlockSpec((tile_b, c_pad), lambda bi, mi: (bi, 0)),
        ),
        compiler_params=pltpu.CompilerParams(
            dimension_semantics=("parallel", "arbitrary"),  # reduction last
            vmem_limit_bytes=vmem_limit,
        ),
    )(x_pack, W_pack, b_pack)

    return out[:B, :meta["C"]]


def ensemble_forward(x, W, b, average_func="arithmetic"):
    """Convenience wrapper (packs every call; prefer pack_ensemble_params once)."""
    return ensemble_forward_packed(x, pack_ensemble_params(W, b), average_func)


def _reference(x, W, b, average_func="arithmetic"):
    # Precision-matched reference: same bf16-input / f32-accumulate matmul.
    logits = jnp.einsum("bd,mdc->mbc",
                        x.astype(jnp.bfloat16), W.astype(jnp.bfloat16),
                        preferred_element_type=jnp.float32) + b  # [M, B, C]
    if average_func == "geometric":
        sm = jax.nn.log_softmax(logits, axis=-1)
    else:
        sm = jax.nn.softmax(logits, axis=-1)
    return jnp.sum(sm, axis=0)


if __name__ == "__main__":
    key = jax.random.PRNGKey(0)
    B, D, C, M = 8, 32, 16, 3  # batch, features, classes, ensemble members

    kx, kw, kb = jax.random.split(key, 3)
    x = jax.random.normal(kx, (B, D), dtype=jnp.float32)
    # Deterministic synthetic "model" parameters (one Linear(D, C) per member).
    W = jax.random.normal(kw, (M, D, C), dtype=jnp.float32) * 0.1
    b = jax.random.normal(kb, (M, 1, C), dtype=jnp.float32) * 0.1

    # Pack parameters ONCE (hoisted out of the per-call hot path).
    packed = pack_ensemble_params(W, b)

    for avg in ("arithmetic", "geometric"):
        out = jax.block_until_ready(
            ensemble_forward_packed(x, packed, average_func=avg))
        ref = _reference(x, W, b, average_func=avg)
        assert out.shape == (B, C)
        err = float(jnp.max(jnp.abs(out - ref)))
        assert jnp.allclose(out, ref, atol=5e-3, rtol=5e-3), (
            f"mismatch for {avg}: max err {err}")

    print("KERNEL_OK")
</pallas_src>

<mosaic_0001>
module attributes {stable_mosaic.version = 11 : i64} {
  func.func @_ensemble_kernel(%arg0: i32, %arg1: i32, %arg2: memref<16x32xbf16, #tpu.memory_space<vmem>>, %arg3: memref<32x384xbf16, #tpu.memory_space<vmem>>, %arg4: memref<3x1x128xf32, #tpu.memory_space<vmem>>, %arg5: memref<16x128xf32, #tpu.memory_space<vmem>>) attributes {dimension_semantics = [#tpu.dimension_semantics<parallel>, #tpu.dimension_semantics<arbitrary>], iteration_bounds = array<i64: 1, 1>, scalar_prefetch = 0 : i64, scratch_operands = 0 : i64, tpu.core_type = #tpu.core_type<tc>, window_params = [{transform_indices = @transform_0, window_bounds = array<i64: 16, 32>}, {transform_indices = @transform_1, window_bounds = array<i64: 32, 384>}, {transform_indices = @transform_2, window_bounds = array<i64: 3, 1, 128>}, {transform_indices = @transform_3, window_bounds = array<i64: 16, 128>}]} {
    %c0_i32 = arith.constant 0 : i32
    %0 = arith.cmpi eq, %arg1, %c0_i32 : i32
    %1 = arith.extui %0 : i1 to i32
    %c0_i32_0 = arith.constant 0 : i32
    %2 = arith.cmpi ne, %1, %c0_i32_0 : i32
    scf.if %2 {
      %cst_34 = arith.constant 0.000000e+00 : f32
      %73 = vector.broadcast %cst_34 : f32 to vector<16x128xf32>
      %c0_35 = arith.constant 0 : index
      %c0_36 = arith.constant 0 : index
      %74 = vector.load %arg5[%c0_35, %c0_36] : memref<16x128xf32, #tpu.memory_space<vmem>>, vector<16x128xf32>
      tpu.vector_store %arg5[%c0_35, %c0_36], %73 {strides = array<i32>} : memref<16x128xf32, #tpu.memory_space<vmem>>, vector<16x128xf32>,
    } else {
    }
    %c0 = arith.constant 0 : index
    %c0_1 = arith.constant 0 : index
    %3 = vector.load %arg2[%c0, %c0_1] : memref<16x32xbf16, #tpu.memory_space<vmem>>, vector<16x32xbf16>
    %c0_2 = arith.constant 0 : index
    %c0_3 = arith.constant 0 : index
    %4 = vector.load %arg3[%c0_2, %c0_3] : memref<32x384xbf16, #tpu.memory_space<vmem>>, vector<32x256xbf16>
    %cst = arith.constant dense<0.000000e+00> : vector<16x256xf32>
    %5 = tpu.matmul %3, %4, %cst {dimension_numbers = #tpu.dot_dimension_numbers<[1], [0], [0], [1], [0, 0, 1, 1], [], []>} : vector<16x32xbf16>, vector<32x256xbf16>, vector<16x256xf32> -> vector<16x256xf32>
    %6 = vector.extract_strided_slice %5 {offsets = [0, 0], sizes = [16, 128], strides = [1, 1]} : vector<16x256xf32> to vector<16x128xf32>
    %c0_4 = arith.constant 0 : index
    %c0_5 = arith.constant 0 : index
    %c0_6 = arith.constant 0 : index
    %7 = vector.load %arg4[%c0_4, %c0_5, %c0_6] : memref<3x1x128xf32, #tpu.memory_space<vmem>>, vector<1x1x128xf32>
    %8 = vector.shape_cast %7 : vector<1x1x128xf32> to vector<1x128xf32>
    %9 = vector.broadcast %8 : vector<1x128xf32> to vector<16x128xf32>
    %10 = arith.addf %6, %9 : vector<16x128xf32>
    %cst_7 = arith.constant dense<0xFF800000> : vector<16xf32>
    %11 = vector.multi_reduction <maximumf>, %10, %cst_7 [1] : vector<16x128xf32> to vector<16xf32>
    %12 = vector.shape_cast %11 : vector<16xf32> to vector<16x1xf32>
    %13 = vector.broadcast %12 : vector<16x1xf32> to vector<16x128xf32>
    %14 = arith.subf %10, %13 : vector<16x128xf32>
    %15 = math.exp %14 : vector<16x128xf32>
    %cst_8 = arith.constant dense<0.000000e+00> : vector<16xf32>
    %16 = vector.multi_reduction <add>, %15, %cst_8 [1] : vector<16x128xf32> to vector<16xf32>
    %17 = vector.shape_cast %16 : vector<16xf32> to vector<16x1xf32>
    %18 = tpu.reciprocal %17 {approx = true} : vector<16x1xf32> -> vector<16x1xf32>
    %19 = arith.mulf %17, %18 : vector<16x1xf32>
    %cst_9 = arith.constant 2.000000e+00 : f32
    %20 = vector.broadcast %cst_9 : f32 to vector<16x1xf32>
    %21 = arith.subf %20, %19 : vector<16x1xf32>
    %22 = arith.mulf %18, %21 : vector<16x1xf32>
    %23 = vector.broadcast %22 : vector<16x1xf32> to vector<16x128xf32>
    %24 = arith.mulf %15, %23 : vector<16x128xf32>
    %c0_10 = arith.constant 0 : index
    %c0_11 = arith.constant 0 : index
    %25 = vector.load %arg5[%c0_10, %c0_11] : memref<16x128xf32, #tpu.memory_space<vmem>>, vector<16x128xf32>
    %26 = arith.addf %25, %24 : vector<16x128xf32>
    %c0_12 = arith.constant 0 : index
    %c0_13 = arith.constant 0 : index
    %27 = vector.load %arg5[%c0_12, %c0_13] : memref<16x128xf32, #tpu.memory_space<vmem>>, vector<16x128xf32>
    tpu.vector_store %arg5[%c0_12, %c0_13], %26 {strides = array<i32>} : memref<16x128xf32, #tpu.memory_space<vmem>>, vector<16x128xf32>,
    %28 = vector.extract_strided_slice %5 {offsets = [0, 128], sizes = [16, 128], strides = [1, 1]} : vector<16x256xf32> to vector<16x128xf32>
    %c1 = arith.constant 1 : index
    %c0_14 = arith.constant 0 : index
    %c0_15 = arith.constant 0 : index
    %29 = vector.load %arg4[%c1, %c0_14, %c0_15] : memref<3x1x128xf32, #tpu.memory_space<vmem>>, vector<1x1x128xf32>
    %30 = vector.shape_cast %29 : vector<1x1x128xf32> to vector<1x128xf32>
    %31 = vector.broadcast %30 : vector<1x128xf32> to vector<16x128xf32>
    %32 = arith.addf %28, %31 : vector<16x128xf32>
    %cst_16 = arith.constant dense<0xFF800000> : vector<16xf32>
    %33 = vector.multi_reduction <maximumf>, %32, %cst_16 [1] : vector<16x128xf32> to vector<16xf32>
    %34 = vector.shape_cast %33 : vector<16xf32> to vector<16x1xf32>
    %35 = vector.broadcast %34 : vector<16x1xf32> to vector<16x128xf32>
    %36 = arith.subf %32, %35 : vector<16x128xf32>
    %37 = math.exp %36 : vector<16x128xf32>
    %cst_17 = arith.constant dense<0.000000e+00> : vector<16xf32>
    %38 = vector.multi_reduction <add>, %37, %cst_17 [1] : vector<16x128xf32> to vector<16xf32>
    %39 = vector.shape_cast %38 : vector<16xf32> to vector<16x1xf32>
    %40 = tpu.reciprocal %39 {approx = true} : vector<16x1xf32> -> vector<16x1xf32>
    %41 = arith.mulf %39, %40 : vector<16x1xf32>
    %cst_18 = arith.constant 2.000000e+00 : f32
    %42 = vector.broadcast %cst_18 : f32 to vector<16x1xf32>
    %43 = arith.subf %42, %41 : vector<16x1xf32>
    %44 = arith.mulf %40, %43 : vector<16x1xf32>
    %45 = vector.broadcast %44 : vector<16x1xf32> to vector<16x128xf32>
    %46 = arith.mulf %37, %45 : vector<16x128xf32>
    %c0_19 = arith.constant 0 : index
    %c0_20 = arith.constant 0 : index
    %47 = vector.load %arg5[%c0_19, %c0_20] : memref<16x128xf32, #tpu.memory_space<vmem>>, vector<16x128xf32>
    %48 = arith.addf %47, %46 : vector<16x128xf32>
    %c0_21 = arith.constant 0 : index
    %c0_22 = arith.constant 0 : index
    %49 = vector.load %arg5[%c0_21, %c0_22] : memref<16x128xf32, #tpu.memory_space<vmem>>, vector<16x128xf32>
    tpu.vector_store %arg5[%c0_21, %c0_22], %48 {strides = array<i32>} : memref<16x128xf32, #tpu.memory_space<vmem>>, vector<16x128xf32>,
    %c0_23 = arith.constant 0 : index
    %c256 = arith.constant 256 : index
    %50 = vector.load %arg3[%c0_23, %c256] : memref<32x384xbf16, #tpu.memory_space<vmem>>, vector<32x128xbf16>
    %cst_24 = arith.constant dense<0.000000e+00> : vector<16x128xf32>
    %51 = tpu.matmul %3, %50, %cst_24 {dimension_numbers = #tpu.dot_dimension_numbers<[1], [0], [0], [1], [0, 0, 1, 1], [], []>} : vector<16x32xbf16>, vector<32x128xbf16>, vector<16x128xf32> -> vector<16x128xf32>
    %c2 = arith.constant 2 : index
    %c0_25 = arith.constant 0 : index
    %c0_26 = arith.constant 0 : index
    %52 = vector.load %arg4[%c2, %c0_25, %c0_26] : memref<3x1x128xf32, #tpu.memory_space<vmem>>, vector<1x1x128xf32>
    %53 = vector.shape_cast %52 : vector<1x1x128xf32> to vector<1x128xf32>
    %54 = vector.broadcast %53 : vector<1x128xf32> to vector<16x128xf32>
    %55 = arith.addf %51, %54 : vector<16x128xf32>
    %cst_27 = arith.constant dense<0xFF800000> : vector<16xf32>
    %56 = vector.multi_reduction <maximumf>, %55, %cst_27 [1] : vector<16x128xf32> to vector<16xf32>
    %57 = vector.shape_cast %56 : vector<16xf32> to vector<16x1xf32>
    %58 = vector.broadcast %57 : vector<16x1xf32> to vector<16x128xf32>
    %59 = arith.subf %55, %58 : vector<16x128xf32>
    %60 = math.exp %59 : vector<16x128xf32>
    %cst_28 = arith.constant dense<0.000000e+00> : vector<16xf32>
    %61 = vector.multi_reduction <add>, %60, %cst_28 [1] : vector<16x128xf32> to vector<16xf32>
    %62 = vector.shape_cast %61 : vector<16xf32> to vector<16x1xf32>
    %63 = tpu.reciprocal %62 {approx = true} : vector<16x1xf32> -> vector<16x1xf32>
    %64 = arith.mulf %62, %63 : vector<16x1xf32>
    %cst_29 = arith.constant 2.000000e+00 : f32
    %65 = vector.broadcast %cst_29 : f32 to vector<16x1xf32>
    %66 = arith.subf %65, %64 : vector<16x1xf32>
    %67 = arith.mulf %63, %66 : vector<16x1xf32>
    %68 = vector.broadcast %67 : vector<16x1xf32> to vector<16x128xf32>
    %69 = arith.mulf %60, %68 : vector<16x128xf32>
    %c0_30 = arith.constant 0 : index
    %c0_31 = arith.constant 0 : index
    %70 = vector.load %arg5[%c0_30, %c0_31] : memref<16x128xf32, #tpu.memory_space<vmem>>, vector<16x128xf32>
    %71 = arith.addf %70, %69 : vector<16x128xf32>
    %c0_32 = arith.constant 0 : index
    %c0_33 = arith.constant 0 : index
    %72 = vector.load %arg5[%c0_32, %c0_33] : memref<16x128xf32, #tpu.memory_space<vmem>>, vector<16x128xf32>
    tpu.vector_store %arg5[%c0_32, %c0_33], %71 {strides = array<i32>} : memref<16x128xf32, #tpu.memory_space<vmem>>, vector<16x128xf32>,
    return
  }
  func.func @transform_0(%arg0: i32, %arg1: i32) -> (i32, i32) {
    %c0_i32 = arith.constant 0 : i32
    %c0_i32_0 = arith.constant 0 : i32
    return %arg0, %c0_i32 : i32, i32
  }
  func.func @transform_1(%arg0: i32, %arg1: i32) -> (i32, i32) {
    %c0_i32 = arith.constant 0 : i32
    %c0_i32_0 = arith.constant 0 : i32
    return %c0_i32, %arg1 : i32, i32
  }
  func.func @transform_2(%arg0: i32, %arg1: i32) -> (i32, i32, i32) {
    %c0_i32 = arith.constant 0 : i32
    %c0_i32_0 = arith.constant 0 : i32
    %c0_i32_1 = arith.constant 0 : i32
    return %arg1, %c0_i32, %c0_i32_0 : i32, i32, i32
  }
  func.func @transform_3(%arg0: i32, %arg1: i32) -> (i32, i32) {
    %c0_i32 = arith.constant 0 : i32
    %c0_i32_0 = arith.constant 0 : i32
    return %arg0, %c0_i32 : i32, i32
  }
}

</mosaic_0001>

<llo_original>
// kernel: tpu_custom_call.1
$region0: #{tpu_custom_call.1}
  #allocation0 [shape = 'u32[]', space=smem, size = 0x4, offset = 0x4, fixed_abs, tag = 'smem constant byte address 0x4 - core index']
  #allocation1 [shape = 'u32[144,128]{1,0:T(1,128)}', space=vmem, size = 0x12000, scoped, tag = 'internal scratch']
  %s0 = inlined_call_operand.hbm [shape: bf16[16,32], index: 0, kind: input, shape index: {}]
  %s1 = inlined_call_operand.hbm [shape: bf16[32,384], index: 1, kind: input, shape index: {}]
  %s2 = inlined_call_operand.vmem [shape: f32[3,1,128], index: 2, kind: input, shape index: {}]
  %s3 = inlined_call_operand.hbm [shape: f32[16,128], index: 3, kind: output, shape index: {}]
  %s4 = sld [smem:[#allocation0]]
  $region34: #{tpu_custom_call.1} parent=0
    _
  %s6 = ssub.s32 1, %s4
  %s7 = scalar_select 0, %s6, %s4
  $region1: #{tpu_custom_call.1} parent=0
    #allocation2 [shape = 'u8[4096]{0}', space=vmem, size = 0x1000, scoped, tag = 'input window, operand 0, single buffered']
    #allocation3 [shape = 's32[1]{0}', space=sflag, size = 0x4, scoped, tag = 'scoped memory for tpu_custom_call.1']
    #allocation4 [shape = 's32[1]{0}', space=sflag, size = 0x4, scoped, tag = 'scoped memory for tpu_custom_call.1']
    #allocation5 [shape = 'u8[24576]{0}', space=vmem, size = 0x6000, scoped, tag = 'input window, operand 1, single buffered']
    #allocation6 [shape = 's32[1]{0}', space=sflag, size = 0x4, scoped, tag = 'scoped memory for tpu_custom_call.1']
    #allocation7 [shape = 'u8[8192]{0}', space=vmem, size = 0x2000, scoped, tag = 'output window, operand 0, single buffered']
    %8 = vsyncpa [#allocation3], 0
    %9 = vsyncpa [#allocation6], 0
    %10 = vsyncpa [#allocation4], 0
    // Predicated region
    $region2: #{tpu_custom_call.1} parent=1 // pred_check
      _
    $region3: #{tpu_custom_call.1} parent=1 // pred_check_branch
      %12 = sbr.rel (0) target = $region5
    $region4: #{tpu_custom_call.1} parent=1 // pred_region
      %s14 = ssub.s32 128, 128
      %15 = vsyncadd [#allocation3], %s14
      %s16 = sshll.u32 [#allocation2], 4
      %s17 = int_to_ptr.vmem [resolvable:$true] %s16
      %22 = dma.hbm_to_vmem [thread:$0]  %s0, 128, %s17, [#allocation3], 64, 64, 4
    $region5: #{tpu_custom_call.1} parent=1 // pred_fallthru
      _
    // Predicated region
    $region6: #{tpu_custom_call.1} parent=1 // pred_check
      _
    $region7: #{tpu_custom_call.1} parent=1 // pred_check_branch
      %24 = sbr.rel (0) target = $region9
    $region8: #{tpu_custom_call.1} parent=1 // pred_region
      %s26 = ssub.s32 768, 768
      %27 = vsyncadd [#allocation6], %s26
      %s28 = sshll.u32 [#allocation5], 4
      %s29 = int_to_ptr.vmem [resolvable:$true] %s28
      %34 = dma.hbm_to_vmem [thread:$0]  %s1, 768, %s29, [#allocation6], 192, 192, 12
    $region9: #{tpu_custom_call.1} parent=1 // pred_fallthru
      _
    // Predicated region
    $region10: #{tpu_custom_call.1} parent=1 // pred_check
      _
    $region11: #{tpu_custom_call.1} parent=1 // pred_check_branch
      %36 = sbr.rel (0) target = $region13
    $region12: #{tpu_custom_call.1} parent=1 // pred_region
      _
    $region13: #{tpu_custom_call.1} parent=1 // pred_fallthru
      _
    // Predicated region
    $region14: #{tpu_custom_call.1} parent=1 // pred_check
      _
    $region15: #{tpu_custom_call.1} parent=1 // pred_check_branch
      %38 = sbr.rel (0) target = $region17
    $region16: #{tpu_custom_call.1} parent=1 // pred_region
      %39 = dma.done [#allocation3], 128
    $region17: #{tpu_custom_call.1} parent=1 // pred_fallthru
      _
    // Predicated region
    $region18: #{tpu_custom_call.1} parent=1 // pred_check
      _
    $region19: #{tpu_custom_call.1} parent=1 // pred_check_branch
      %41 = sbr.rel (0) target = $region21
    $region20: #{tpu_custom_call.1} parent=1 // pred_region
      %42 = dma.done [#allocation6], 768
    $region21: #{tpu_custom_call.1} parent=1 // pred_fallthru
      _
    %p44 = scmp.eq.s32.totalorder 0, 0
    // Predicated region
    $region22: #{tpu_custom_call.1} parent=1 // pred_check
      %p45 = pneg %p44
    $region23: #{tpu_custom_call.1} parent=1 // pred_check_branch
      %47 = sbr.rel (%p45) target = $region25
    $region24: #{tpu_custom_call.1} parent=1 // pred_region
      %48 = vst [vmem:[#allocation7] sm:$0xff] 0.0
      %49 = vst [vmem:[#allocation7 + $0x8] sm:$0xff] 0.0
    $region25: #{tpu_custom_call.1} parent=1 // pred_fallthru
      _
    %v50 = vld [vmem:[#allocation2] sm:$0xf]
    %v51 = vld [vmem:[#allocation2 + $0x4] sm:$0xf]
    %v52 = vld [vmem:[#allocation5] sm:$0xff]
    %v53 = vld [vmem:[#allocation5 + $0xc] sm:$0xff]
    %v54 = vld [vmem:[#allocation5 + $0x18] sm:$0xff]
    %v55 = vld [vmem:[#allocation5 + $0x24] sm:$0xff]
    %v58 = vunpack.c.l.b16 %v50
    %v59 = vunpack.c.l.b16 %v51
    %v60 = vpack.c.b16 %v59, %v58
    %v65 = vunpack.c.l.b16 %v52
    %v66 = vunpack.c.h.b16 %v52
    %v67 = vunpack.c.l.b16 %v53
    %v68 = vunpack.c.h.b16 %v53
    %v69 = vunpack.c.l.b16 %v54
    %v70 = vunpack.c.h.b16 %v54
    %v71 = vunpack.c.l.b16 %v55
    %v72 = vunpack.c.h.b16 %v55
    %v73 = vpack.c.b16 %v67, %v65
    %v74 = vpack.c.b16 %v68, %v66
    %v75 = vpack.c.b16 %v71, %v69
    %v76 = vpack.c.b16 %v72, %v70
    %vm81 = vcmask 261120
    %v83 = vsel %vm81, %v60, 0
    %85 = vmatprep.subr.bf16.mxu0 %v74
    %86 = vmatpush1.bf16.msra.mxu0 %v73
    %87 = vmatprep.subr.bf16.mxu0 %v76
    %88 = vmatpush1.bf16.msra.mxu0 %v75
    %89 = vmatprep.subr.bf16.mxu0 0
    %90 = vmatpush1.bf16.msra.mxu0 0
    %91 = vmatprep.subr.bf16.mxu0 0
    %92 = vmatpush1.bf16.msra.mxu0 0
    %93 = vmatprep.subr.bf16.mxu0 0
    %94 = vmatpush1.bf16.msra.mxu0 0
    %95 = vmatprep.subr.bf16.mxu0 0
    %96 = vmatpush1.bf16.msra.mxu0 0
    %97 = vmatprep.subr.bf16.mxu0 0
    %98 = vmatpush1.bf16.msra.mxu0 0
    %99 = vmatprep.subr.bf16.mxu0 0
    %100 = vmatpush1.bf16.msra.mxu0 0
    %101 = vmatprep.subr.bf16.mxu0 0
    %102 = vmatpush1.bf16.msra.mxu0 0
    %103 = vmatprep.subr.bf16.mxu0 0
    %104 = vmatpush1.bf16.msra.mxu0 0
    %105 = vmatprep.subr.bf16.mxu0 0
    %106 = vmatpush1.bf16.msra.mxu0 0
    %107 = vmatprep.subr.bf16.mxu0 0
    %108 = vmatpush1.bf16.msra.mxu0 0
    %109 = vmatprep.subr.bf16.mxu0 0
    %110 = vmatpush1.bf16.msra.mxu0 0
    %111 = vmatprep.subr.bf16.mxu0 0
    %112 = vmatpush1.bf16.msra.mxu0 0
    %113 = vmatprep.subr.bf16.mxu0 0
    %114 = vmatpush1.bf16.msra.mxu0 0
    %115 = vmatprep.subr.bf16.mxu0 0
    %116 = vmatpush1.bf16.msra.mxu0 0
    %117 = vmatprep.mubr.bf16.mxu0 0
    %118 = vmatmul.mubr.bf16.gmra.mrb[0].mxu0 %v83
    %v119 = vpop.f32.mrb[0].mxu0
    %v120 = vadd.f32 0.0, %v119
    %v121 = vpop.f32.mrb[0].mxu0
    %v122 = vadd.f32 0.0, %v121
    %v123 = vpop.f32.mrb[0].mxu0
    %v124 = vadd.f32 0.0, %v123
    %v125 = vpop.f32.mrb[0].mxu0
    %v126 = vadd.f32 0.0, %v125
    %127 = vdwg.mxu0
    %v128 = vld [vmem:[%s2] sm:$0x1]
    %v130 = vlaneseq
    %v131 = vshrl.u32 %v130, 7
    %v132 = vsub.s32 0, %v131
    %v133 = vrot.slane %v128, %v132
    %v135 = vadd.f32 %v120, %v133
    %v136 = vadd.f32 %v124, %v133
    %137 = vmax.xlane.f32.xlu0 %v135
    %v138 = vpop.xlane.xlu0 %137
    %139 = vmax.xlane.f32.xlu0 %v136
    %v140 = vpop.xlane.xlu0 %139
    %v141 = vsub.f32 %v135, %v138
    %v142 = vsub.f32 %v136, %v140
    %v143 = vmul.f32 %v141, 1.442695
    %v144 = vpow.pop %v143
    %v145 = vmul.f32 %v142, 1.442695
    %v146 = vpow.pop %v145
    %147 = vadd.xlane.f32.xlu0 %v144
    %v148 = vpop.xlane.xlu0 %147
    %149 = vadd.xlane.f32.xlu0 %v146
    %v150 = vpop.xlane.xlu0 %149
    %v151 = vrcp.pop %v148
    %v152 = vrcp.pop %v150
    %v153 = vmul.f32 %v148, %v151
    %v154 = vmul.f32 %v150, %v152
    %v155 = vsub.f32 2.0, %v153
    %v156 = vsub.f32 2.0, %v154
    %v157 = vmul.f32 %v151, %v155
    %v158 = vmul.f32 %v152, %v156
    %v159 = vmul.f32 %v144, %v157
    %v160 = vmul.f32 %v146, %v158
    %v161 = vld [vmem:[#allocation7] sm:$0xff]
    %v162 = vld [vmem:[#allocation7 + $0x8] sm:$0xff]
    %v163 = vadd.f32 %v161, %v159
    %v164 = vadd.f32 %v162, %v160
    %165 = vst [vmem:[#allocation7] sm:$0xff] %v163
    %166 = vst [vmem:[#allocation7 + $0x8] sm:$0xff] %v164
    %s167 = scalar_lea.vmem %s2, 1
    %v168 = vld [vmem:[%s167] sm:$0x1]
    %v170 = vlaneseq
    %v171 = vshrl.u32 %v170, 7
    %v172 = vsub.s32 0, %v171
    %v173 = vrot.slane %v168, %v172
    %v175 = vadd.f32 %v122, %v173
    %v176 = vadd.f32 %v126, %v173
    %177 = vmax.xlane.f32.xlu0 %v175
    %v178 = vpop.xlane.xlu0 %177
    %179 = vmax.xlane.f32.xlu0 %v176
    %v180 = vpop.xlane.xlu0 %179
    %v181 = vsub.f32 %v175, %v178
    %v182 = vsub.f32 %v176, %v180
    %v183 = vmul.f32 %v181, 1.442695
    %v184 = vpow.pop %v183
    %v185 = vmul.f32 %v182, 1.442695
    %v186 = vpow.pop %v185
    %187 = vadd.xlane.f32.xlu0 %v184
    %v188 = vpop.xlane.xlu0 %187
    %189 = vadd.xlane.f32.xlu0 %v186
    %v190 = vpop.xlane.xlu0 %189
    %v191 = vrcp.pop %v188
    %v192 = vrcp.pop %v190
    %v193 = vmul.f32 %v188, %v191
    %v194 = vmul.f32 %v190, %v192
    %v195 = vsub.f32 2.0, %v193
    %v196 = vsub.f32 2.0, %v194
    %v197 = vmul.f32 %v191, %v195
    %v198 = vmul.f32 %v192, %v196
    %v199 = vmul.f32 %v184, %v197
    %v200 = vmul.f32 %v186, %v198
    %v201 = vld [vmem:[#allocation7] sm:$0xff]
    %v202 = vld [vmem:[#allocation7 + $0x8] sm:$0xff]
    %v203 = vadd.f32 %v201, %v199
    %v204 = vadd.f32 %v202, %v200
    %205 = vst [vmem:[#allocation7] sm:$0xff] %v203
    %206 = vst [vmem:[#allocation7 + $0x8] sm:$0xff] %v204
    %v207 = vld [vmem:[#allocation5 + $0x8] sm:$0xf]
    %v208 = vld [vmem:[#allocation5 + $0x14] sm:$0xf]
    %v209 = vld [vmem:[#allocation5 + $0x20] sm:$0xf]
    %v210 = vld [vmem:[#allocation5 + $0x2c] sm:$0xf]
    %s211 = scalar_lea.vmem %s2, 2
    %v212 = vld [vmem:[%s211] sm:$0x1]
    %v214 = vlaneseq
    %v215 = vshrl.u32 %v214, 7
    %v216 = vsub.s32 0, %v215
    %v217 = vrot.slane %v212, %v216
    %v223 = vunpack.c.l.b16 %v207
    %v224 = vunpack.c.l.b16 %v208
    %v225 = vunpack.c.l.b16 %v209
    %v226 = vunpack.c.l.b16 %v210
    %v227 = vpack.c.b16 %v224, %v223
    %v228 = vpack.c.b16 %v226, %v225
    %231 = vmatprep.subr.bf16.mxu0 0
    %232 = vmatpush1.bf16.msra.mxu0 %v227
    %233 = vmatprep.subr.bf16.mxu0 0
    %234 = vmatpush1.bf16.msra.mxu0 %v228
    %235 = vmatprep.subr.bf16.mxu0 0
    %236 = vmatpush1.bf16.msra.mxu0 0
    %237 = vmatprep.subr.bf16.mxu0 0
    %238 = vmatpush1.bf16.msra.mxu0 0
    %239 = vmatprep.subr.bf16.mxu0 0
    %240 = vmatpush1.bf16.msra.mxu0 0
    %241 = vmatprep.subr.bf16.mxu0 0
    %242 = vmatpush1.bf16.msra.mxu0 0
    %243 = vmatprep.subr.bf16.mxu0 0
    %244 = vmatpush1.bf16.msra.mxu0 0
    %245 = vmatprep.subr.bf16.mxu0 0
    %246 = vmatpush1.bf16.msra.mxu0 0
    %247 = vmatprep.subr.bf16.mxu0 0
    %248 = vmatpush1.bf16.msra.mxu0 0
    %249 = vmatprep.subr.bf16.mxu0 0
    %250 = vmatpush1.bf16.msra.mxu0 0
    %251 = vmatprep.subr.bf16.mxu0 0
    %252 = vmatpush1.bf16.msra.mxu0 0
    %253 = vmatprep.subr.bf16.mxu0 0
    %254 = vmatpush1.bf16.msra.mxu0 0
    %255 = vmatprep.subr.bf16.mxu0 0
    %256 = vmatpush1.bf16.msra.mxu0 0
    %257 = vmatprep.subr.bf16.mxu0 0
    %258 = vmatpush1.bf16.msra.mxu0 0
    %259 = vmatprep.subr.bf16.mxu0 0
    %260 = vmatpush1.bf16.msra.mxu0 0
    %261 = vmatprep.subr.bf16.mxu0 0
    %262 = vmatpush1.bf16.msra.mxu0 0
    %263 = vmatprep.mubr.bf16.mxu0 0
    %264 = vmatmul.mubr.bf16.gmra.mrb[0].mxu0 %v83
    %v265 = vpop.f32.mrb[0].mxu0
    %v266 = vadd.f32 %v217, %v265
    %v267 = vpop.f32.mrb[0].mxu0
    %v268 = vpop.f32.mrb[0].mxu0
    %v269 = vadd.f32 %v217, %v268
    %v270 = vpop.f32.mrb[0].mxu0
    %271 = vdwg.mxu0
    %272 = vmax.xlane.f32.xlu0 %v266
    %v273 = vpop.xlane.xlu0 %272
    %274 = vmax.xlane.f32.xlu0 %v269
    %v275 = vpop.xlane.xlu0 %274
    %v276 = vsub.f32 %v266, %v273
    %v277 = vsub.f32 %v269, %v275
    %v278 = vmul.f32 %v276, 1.442695
    %v279 = vpow.pop %v278
    %v280 = vmul.f32 %v277, 1.442695
    %v281 = vpow.pop %v280
    %282 = vadd.xlane.f32.xlu0 %v279
    %v283 = vpop.xlane.xlu0 %282
    %284 = vadd.xlane.f32.xlu0 %v281
    %v285 = vpop.xlane.xlu0 %284
    %v286 = vrcp.pop %v283
    %v287 = vrcp.pop %v285
    %v288 = vmul.f32 %v283, %v286
    %v289 = vmul.f32 %v285, %v287
    %v290 = vsub.f32 2.0, %v288
    %v291 = vsub.f32 2.0, %v289
    %v292 = vmul.f32 %v286, %v290
    %v293 = vmul.f32 %v287, %v291
    %v294 = vmul.f32 %v279, %v292
    %v295 = vmul.f32 %v281, %v293
    %v296 = vld [vmem:[#allocation7] sm:$0xff]
    %v297 = vld [vmem:[#allocation7 + $0x8] sm:$0xff]
    %v298 = vadd.f32 %v296, %v294
    %v299 = vadd.f32 %v297, %v295
    %300 = vst [vmem:[#allocation7] sm:$0xff] %v298
    %301 = vst [vmem:[#allocation7 + $0x8] sm:$0xff] %v299
    // Predicated region
    $region26: #{tpu_custom_call.1} parent=1 // pred_check
      _
    $region27: #{tpu_custom_call.1} parent=1 // pred_check_branch
      %303 = sbr.rel (0) target = $region29
    $region28: #{tpu_custom_call.1} parent=1 // pred_region
      %s305 = ssub.s32 256, 256
      %306 = vsyncadd [#allocation4], %s305
      %s307 = sshll.u32 [#allocation7], 4
      %s308 = int_to_ptr.vmem [resolvable:$true] %s307
      %313 = dma.vmem_to_hbm [thread:$0]  %s308, 256, %s3, [#allocation4], 128, 128, 8
    $region29: #{tpu_custom_call.1} parent=1 // pred_fallthru
      _
    // Predicated region
    $region30: #{tpu_custom_call.1} parent=1 // pred_check
      _
    $region31: #{tpu_custom_call.1} parent=1 // pred_check_branch
      %315 = sbr.rel (0) target = $region33
    $region32: #{tpu_custom_call.1} parent=1 // pred_region
      %316 = dma.done [#allocation4], 256
    $region33: #{tpu_custom_call.1} parent=1 // pred_fallthru
      _
    %317 = vsyncpa [#allocation3], 1
    %318 = vsyncpa [#allocation6], 1
    %319 = vsyncpa [#allocation4], 1

</llo_original>
